<compile_context>
chip_gen: v7x
topology: tpu7x:2x2x1
jax: 0.10.0
libtpu: 0.0.40
codegen_flags: <defaults>
</compile_context>

<pallas_src>
import functools
import math

import jax
import jax.numpy as jnp
from jax import lax
from jax.experimental import pallas as pl
from jax.experimental.pallas import tpu as pltpu

EPS = 1e-12  # TF-style LayerNorm epsilon (inside the sqrt)


# ----------------------------------------------------------------------------
# Kernel
# ----------------------------------------------------------------------------
def _attn_block_body(x, w_qkvr_ref, b_qkvr_ref, w_dd_ref, vecs_ref, wl_ref, bl_ref):
    """SelfAttention(2 heads) + residual + TF LayerNorm, then Linear + ReLU.

    Head handling without sub-vreg lane slices of activations:
      * the packed projection also produces a half-swapped copy of K,
      * per-head probabilities are broadcast onto full-width lane masks,
      * the cross-head half of the dense matmul uses a row-swapped copy of
        the dense weight (precomputed on the host at packing time).
    """
    c = x.shape[-1]
    hd = c // 2                       # num_attention_heads = 2
    scale = 1.0 / math.sqrt(hd)

    # One MXU push for Q | K | V | K_halfswapped.
    proj = (jnp.dot(x, w_qkvr_ref[...], preferred_element_type=jnp.float32)
            + b_qkvr_ref[...])
    q = proj[:, 0 * c:1 * c]
    k = proj[:, 1 * c:2 * c]
    v = proj[:, 2 * c:3 * c]
    kr = proj[:, 3 * c:4 * c]         # k with its two head-halves swapped

    lane = lax.broadcasted_iota(jnp.int32, (1, c), 1)
    lo = lane < hd                    # lanes belonging to head 0

    qk = q * k
    qc = q * kr
    zero = jnp.zeros_like(qk)
    # 2x2 attention-score matrix per batch row, via masked lane reductions.
    s00 = jnp.sum(jnp.where(lo, qk, zero), axis=-1, keepdims=True) * scale
    s01 = jnp.sum(jnp.where(lo, qc, zero), axis=-1, keepdims=True) * scale
    s10 = jnp.sum(jnp.where(lo, zero, qc), axis=-1, keepdims=True) * scale
    s11 = jnp.sum(jnp.where(lo, zero, qk), axis=-1, keepdims=True) * scale

    # Softmax over the key-head axis, per query head (reciprocal on the EUP).
    m0 = jnp.maximum(s00, s01)
    e00 = jnp.exp(s00 - m0)
    e01 = jnp.exp(s01 - m0)
    inv0 = pl.reciprocal(e00 + e01, approx=False)
    p00, p01 = e00 * inv0, e01 * inv0

    m1 = jnp.maximum(s10, s11)
    e10 = jnp.exp(s10 - m1)
    e11 = jnp.exp(s11 - m1)
    inv1 = pl.reciprocal(e10 + e11, approx=False)
    p10, p11 = e10 * inv1, e11 * inv1

    # context @ dense as two full-width matmuls: the direct part uses wd,
    # the cross-head part uses the half-row-swapped wd.
    coef_dir = jnp.where(lo, p00, p11)          # (B, c)
    coef_crs = jnp.where(lo, p10, p01)          # (B, c)
    vecs = vecs_ref[...]                        # (3, c): bd / gamma / beta
    bd, gamma, beta = vecs[0:1, :], vecs[1:2, :], vecs[2:3, :]
    h = (jnp.dot(coef_dir * v, w_dd_ref[0], preferred_element_type=jnp.float32)
         + jnp.dot(coef_crs * v, w_dd_ref[1], preferred_element_type=jnp.float32)
         + bd)

    # out_dropout is identity at inference; residual + TF-style LayerNorm.
    res = h + x
    u = jnp.mean(res, axis=-1, keepdims=True)
    d = res - u
    var = jnp.mean(d * d, axis=-1, keepdims=True)
    ln = gamma * (d * lax.rsqrt(var + EPS)) + beta

    # Linear + ReLU that follows the attention block in Clu_Head.forward.
    y = jnp.dot(ln, wl_ref[...], preferred_element_type=jnp.float32) + bl_ref[...]
    return jnp.maximum(y, 0.0)


def _clu_head_kernel(nblocks, x_ref, *rest):
    """Fused forward: all attention blocks + lin_final + Softmax(dim=1)."""
    *blk_refs, fw_ref, fb_ref, out_ref = rest
    x = x_ref[...]
    for i in range(nblocks):                    # static unroll over blocks
        x = _attn_block_body(x, *blk_refs[6 * i:6 * (i + 1)])

    # lin_final + Softmax(dim=1)  (dim=1 == last axis for 2-D activations).
    z = jnp.dot(x, fw_ref[...], preferred_element_type=jnp.float32) + fb_ref[...]
    m = jnp.max(z, axis=-1, keepdims=True)
    e = jnp.exp(z - m)
    out_ref[...] = e * pl.reciprocal(jnp.sum(e, axis=-1, keepdims=True),
                                     approx=False)


# ----------------------------------------------------------------------------
# Host-side weight packing + pallas_call wrapper
# ----------------------------------------------------------------------------
def pack_params(blocks):
    """Pack per-block weights into 6 arrays (1 DMA each) per block."""
    packed = []
    for p in blocks:
        c = p["wq"].shape[0]
        hd = c // 2
        # column-swapped K projection  -> produces k with head halves swapped
        wk_sw = jnp.concatenate([p["wk"][:, hd:], p["wk"][:, :hd]], axis=1)
        bk_sw = jnp.concatenate([p["bk"][:, hd:], p["bk"][:, :hd]], axis=1)
        w_qkvr = jnp.concatenate([p["wq"], p["wk"], p["wv"], wk_sw], axis=1)   # (c, 4c)
        b_qkvr = jnp.concatenate([p["bq"], p["bk"], p["bv"], bk_sw], axis=1)   # (1, 4c)
        # row-swapped dense weight for the cross-head contribution
        wd_sw = jnp.concatenate([p["wd"][hd:, :], p["wd"][:hd, :]], axis=0)
        w_dd = jnp.stack([p["wd"], wd_sw], axis=0)                             # (2, c, c)
        vecs = jnp.concatenate([p["bd"], p["gamma"], p["beta"]], axis=0)       # (3, c)
        packed.append((w_qkvr, b_qkvr, w_dd, vecs, p["wl"], p["bl"]))
    return tuple(packed)


def _whole_spec(shape):
    nd = len(shape)
    # Single block covering the full array; constant index_map keeps weights
    # VMEM-resident across batch-tile grid steps.
    return pl.BlockSpec(shape, lambda i, _nd=nd: (0,) * _nd)


@jax.jit
def clu_head_forward(x, packed_blocks, fw, fb):
    B, c0 = x.shape
    cout = fw.shape[1]
    nblocks = len(packed_blocks)

    # Batch tiling: single step at small B, shards across TensorCores when B
    # grows (dimension_semantics = "parallel").
    tb = B if B <= 128 else 128
    assert B % tb == 0, "batch must be divisible by the batch tile"
    grid = (B // tb,)

    flat_weights = tuple(a for blk in packed_blocks for a in blk) + (fw, fb)
    in_specs = [pl.BlockSpec((tb, c0), lambda i: (i, 0))]
    in_specs += [_whole_spec(a.shape) for a in flat_weights]

    return pl.pallas_call(
        functools.partial(_clu_head_kernel, nblocks),
        out_shape=jax.ShapeDtypeStruct((B, cout), jnp.float32),
        grid=grid,
        in_specs=in_specs,
        out_specs=pl.BlockSpec((tb, cout), lambda i: (i, 0)),
        compiler_params=pltpu.CompilerParams(
            dimension_semantics=("parallel",),
            vmem_limit_bytes=32 * 1024 * 1024),   # explicit, valid on v5e/v6e/v7x
    )(x, *flat_weights)


# ----------------------------------------------------------------------------
# Deterministic parameter init (mirrors nn.Linear / LayerNorm shapes)
# ----------------------------------------------------------------------------
def _init_linear(key, cin, cout):
    k1, k2 = jax.random.split(key)
    bound = 1.0 / math.sqrt(cin)
    w = jax.random.uniform(k1, (cin, cout), jnp.float32, -bound, bound)
    b = jax.random.uniform(k2, (1, cout), jnp.float32, -bound, bound)
    return w, b


def init_clu_head(key, cfg):
    num_layer = len(cfg) - 1
    blocks = []
    for i in range(num_layer - 1):
        c_in, c_out = cfg[i], cfg[i + 1]
        keys = jax.random.split(key, 6)
        key = keys[0]
        wq, bq = _init_linear(keys[1], c_in, c_in)
        wk, bk = _init_linear(keys[2], c_in, c_in)
        wv, bv = _init_linear(keys[3], c_in, c_in)
        wd, bd = _init_linear(keys[4], c_in, c_in)
        wl, bl = _init_linear(keys[5], c_in, c_out)
        blocks.append(dict(
            wq=wq, bq=bq, wk=wk, bk=bk, wv=wv, bv=bv, wd=wd, bd=bd,
            gamma=jnp.ones((1, c_in), jnp.float32),
            beta=jnp.zeros((1, c_in), jnp.float32),
            wl=wl, bl=bl))
    kf, _ = jax.random.split(key)
    fw, fb = _init_linear(kf, cfg[-2], cfg[-1])
    return blocks, fw, fb


# ----------------------------------------------------------------------------
# Pure-JAX reference (mirrors the PyTorch forward exactly)
# ----------------------------------------------------------------------------
def ref_forward(x, blocks, fw, fb):
    for p in blocks:
        B, C = x.shape
        hd = C // 2
        q = x @ p["wq"] + p["bq"]
        k = x @ p["wk"] + p["bk"]
        v = x @ p["wv"] + p["bv"]
        qh = q.reshape(B, 2, hd)
        kh = k.reshape(B, 2, hd)
        vh = v.reshape(B, 2, hd)
        s = jnp.einsum("bid,bjd->bij", qh, kh) / math.sqrt(hd)
        probs = jax.nn.softmax(s, axis=-1)
        ctx = jnp.einsum("bij,bjd->bid", probs, vh).reshape(B, C)
        h = ctx @ p["wd"] + p["bd"]
        r = h + x
        u = r.mean(-1, keepdims=True)
        var = ((r - u) ** 2).mean(-1, keepdims=True)
        ln = p["gamma"] * ((r - u) / jnp.sqrt(var + EPS)) + p["beta"]
        x = jnp.maximum(ln @ p["wl"] + p["bl"], 0.0)
    z = x @ fw + fb
    return jax.nn.softmax(z, axis=1)


if __name__ == "__main__":
    cfg = [32, 32, 8]          # two Linear layers -> one attention block + lin_final
    batch = 8

    key = jax.random.PRNGKey(0)
    kx, kp = jax.random.split(key)
    x = jax.random.normal(kx, (batch, cfg[0]), dtype=jnp.float32)

    blocks, fw, fb = init_clu_head(kp, cfg)
    packed_blocks = pack_params(blocks)

    out = clu_head_forward(x, packed_blocks, fw, fb)
    out = jax.block_until_ready(out)

    ref = ref_forward(x, blocks, fw, fb)
    max_err = float(jnp.max(jnp.abs(out - ref)))
    row_err = float(jnp.max(jnp.abs(jnp.sum(out, axis=1) - 1.0)))
    assert out.shape == (batch, cfg[-1])
    assert max_err < 2e-4, f"mismatch vs reference: {max_err}"
    assert row_err < 1e-4, f"softmax rows not normalized: {row_err}"

    print("KERNEL_OK")
</pallas_src>

<mosaic_0001>
module attributes {stable_mosaic.version = 11 : i64} {
  func.func @_clu_head_kernel(%arg0: i32, %arg1: memref<8x32xf32, #tpu.memory_space<vmem>>, %arg2: memref<32x128xf32, #tpu.memory_space<vmem>>, %arg3: memref<1x128xf32, #tpu.memory_space<vmem>>, %arg4: memref<2x32x32xf32, #tpu.memory_space<vmem>>, %arg5: memref<3x32xf32, #tpu.memory_space<vmem>>, %arg6: memref<32x32xf32, #tpu.memory_space<vmem>>, %arg7: memref<1x32xf32, #tpu.memory_space<vmem>>, %arg8: memref<32x8xf32, #tpu.memory_space<vmem>>, %arg9: memref<1x8xf32, #tpu.memory_space<vmem>>, %arg10: memref<8x8xf32, #tpu.memory_space<vmem>>) attributes {dimension_semantics = [#tpu.dimension_semantics<parallel>], iteration_bounds = array<i64: 1>, scalar_prefetch = 0 : i64, scratch_operands = 0 : i64, tpu.core_type = #tpu.core_type<tc>, window_params = [{transform_indices = @transform_0, window_bounds = array<i64: 8, 32>}, {pipeline_mode = #tpu.pipeline_mode<synchronous>, transform_indices = @transform_1, window_bounds = array<i64: 32, 128>}, {pipeline_mode = #tpu.pipeline_mode<synchronous>, transform_indices = @transform_2, window_bounds = array<i64: 1, 128>}, {pipeline_mode = #tpu.pipeline_mode<synchronous>, transform_indices = @transform_3, window_bounds = array<i64: 2, 32, 32>}, {pipeline_mode = #tpu.pipeline_mode<synchronous>, transform_indices = @transform_4, window_bounds = array<i64: 3, 32>}, {pipeline_mode = #tpu.pipeline_mode<synchronous>, transform_indices = @transform_5, window_bounds = array<i64: 32, 32>}, {pipeline_mode = #tpu.pipeline_mode<synchronous>, transform_indices = @transform_6, window_bounds = array<i64: 1, 32>}, {pipeline_mode = #tpu.pipeline_mode<synchronous>, transform_indices = @transform_7, window_bounds = array<i64: 32, 8>}, {pipeline_mode = #tpu.pipeline_mode<synchronous>, transform_indices = @transform_8, window_bounds = array<i64: 1, 8>}, {transform_indices = @transform_9, window_bounds = array<i64: 8, 8>}]} {
    %c0 = arith.constant 0 : index
    %c0_0 = arith.constant 0 : index
    %0 = vector.load %arg1[%c0, %c0_0] : memref<8x32xf32, #tpu.memory_space<vmem>>, vector<8x32xf32>
    %c0_1 = arith.constant 0 : index
    %c0_2 = arith.constant 0 : index
    %1 = vector.load %arg2[%c0_1, %c0_2] : memref<32x128xf32, #tpu.memory_space<vmem>>, vector<32x128xf32>
    %cst = arith.constant dense<0.000000e+00> : vector<8x128xf32>
    %2 = tpu.matmul %0, %1, %cst {dimension_numbers = #tpu.dot_dimension_numbers<[1], [0], [0], [1], [0, 0, 1, 1], [], []>} : vector<8x32xf32>, vector<32x128xf32>, vector<8x128xf32> -> vector<8x128xf32>
    %c0_3 = arith.constant 0 : index
    %c0_4 = arith.constant 0 : index
    %3 = vector.load %arg3[%c0_3, %c0_4] : memref<1x128xf32, #tpu.memory_space<vmem>>, vector<1x128xf32>
    %4 = vector.broadcast %3 : vector<1x128xf32> to vector<8x128xf32>
    %5 = arith.addf %2, %4 : vector<8x128xf32>
    %6 = vector.extract_strided_slice %5 {offsets = [0, 0], sizes = [8, 32], strides = [1, 1]} : vector<8x128xf32> to vector<8x32xf32>
    %7 = vector.extract_strided_slice %5 {offsets = [0, 32], sizes = [8, 32], strides = [1, 1]} : vector<8x128xf32> to vector<8x32xf32>
    %8 = vector.extract_strided_slice %5 {offsets = [0, 64], sizes = [8, 32], strides = [1, 1]} : vector<8x128xf32> to vector<8x32xf32>
    %9 = vector.extract_strided_slice %5 {offsets = [0, 96], sizes = [8, 32], strides = [1, 1]} : vector<8x128xf32> to vector<8x32xf32>
    %10 = tpu.iota {dimensions = array<i32: 1>} : vector<1x32xi32>
    %c16_i32 = arith.constant 16 : i32
    %11 = vector.broadcast %c16_i32 : i32 to vector<1x32xi32>
    %12 = arith.cmpi slt, %10, %11 : vector<1x32xi32>
    %13 = arith.mulf %6, %7 : vector<8x32xf32>
    %14 = arith.mulf %6, %9 : vector<8x32xf32>
    %cst_5 = arith.constant 0.000000e+00 : f32
    %15 = vector.broadcast %cst_5 : f32 to vector<8x32xf32>
    %16 = vector.shape_cast %12 : vector<1x32xi1> to vector<1x32xi1>
    %17 = vector.broadcast %16 : vector<1x32xi1> to vector<8x32xi1>
    %18 = arith.select %17, %13, %15 : vector<8x32xi1>, vector<8x32xf32>
    %cst_6 = arith.constant dense<0.000000e+00> : vector<8xf32>
    %19 = vector.multi_reduction <add>, %18, %cst_6 [1] : vector<8x32xf32> to vector<8xf32>
    %20 = vector.shape_cast %19 : vector<8xf32> to vector<8x1xf32>
    %cst_7 = arith.constant 2.500000e-01 : f32
    %21 = vector.broadcast %cst_7 : f32 to vector<8x1xf32>
    %22 = arith.mulf %20, %21 : vector<8x1xf32>
    %23 = vector.shape_cast %12 : vector<1x32xi1> to vector<1x32xi1>
    %24 = vector.broadcast %23 : vector<1x32xi1> to vector<8x32xi1>
    %25 = arith.select %24, %14, %15 : vector<8x32xi1>, vector<8x32xf32>
    %cst_8 = arith.constant dense<0.000000e+00> : vector<8xf32>
    %26 = vector.multi_reduction <add>, %25, %cst_8 [1] : vector<8x32xf32> to vector<8xf32>
    %27 = vector.shape_cast %26 : vector<8xf32> to vector<8x1xf32>
    %cst_9 = arith.constant 2.500000e-01 : f32
    %28 = vector.broadcast %cst_9 : f32 to vector<8x1xf32>
    %29 = arith.mulf %27, %28 : vector<8x1xf32>
    %30 = vector.shape_cast %12 : vector<1x32xi1> to vector<1x32xi1>
    %31 = vector.broadcast %30 : vector<1x32xi1> to vector<8x32xi1>
    %32 = arith.select %31, %15, %14 : vector<8x32xi1>, vector<8x32xf32>
    %cst_10 = arith.constant dense<0.000000e+00> : vector<8xf32>
    %33 = vector.multi_reduction <add>, %32, %cst_10 [1] : vector<8x32xf32> to vector<8xf32>
    %34 = vector.shape_cast %33 : vector<8xf32> to vector<8x1xf32>
    %cst_11 = arith.constant 2.500000e-01 : f32
    %35 = vector.broadcast %cst_11 : f32 to vector<8x1xf32>
    %36 = arith.mulf %34, %35 : vector<8x1xf32>
    %37 = vector.shape_cast %12 : vector<1x32xi1> to vector<1x32xi1>
    %38 = vector.broadcast %37 : vector<1x32xi1> to vector<8x32xi1>
    %39 = arith.select %38, %15, %13 : vector<8x32xi1>, vector<8x32xf32>
    %cst_12 = arith.constant dense<0.000000e+00> : vector<8xf32>
    %40 = vector.multi_reduction <add>, %39, %cst_12 [1] : vector<8x32xf32> to vector<8xf32>
    %41 = vector.shape_cast %40 : vector<8xf32> to vector<8x1xf32>
    %cst_13 = arith.constant 2.500000e-01 : f32
    %42 = vector.broadcast %cst_13 : f32 to vector<8x1xf32>
    %43 = arith.mulf %41, %42 : vector<8x1xf32>
    %44 = arith.maximumf %22, %29 : vector<8x1xf32>
    %45 = arith.subf %22, %44 : vector<8x1xf32>
    %46 = math.exp %45 : vector<8x1xf32>
    %47 = arith.subf %29, %44 : vector<8x1xf32>
    %48 = math.exp %47 : vector<8x1xf32>
    %49 = arith.addf %46, %48 : vector<8x1xf32>
    %50 = tpu.reciprocal %49 : vector<8x1xf32> -> vector<8x1xf32>
    %51 = arith.mulf %46, %50 : vector<8x1xf32>
    %52 = arith.mulf %48, %50 : vector<8x1xf32>
    %53 = arith.maximumf %36, %43 : vector<8x1xf32>
    %54 = arith.subf %36, %53 : vector<8x1xf32>
    %55 = math.exp %54 : vector<8x1xf32>
    %56 = arith.subf %43, %53 : vector<8x1xf32>
    %57 = math.exp %56 : vector<8x1xf32>
    %58 = arith.addf %55, %57 : vector<8x1xf32>
    %59 = tpu.reciprocal %58 : vector<8x1xf32> -> vector<8x1xf32>
    %60 = arith.mulf %55, %59 : vector<8x1xf32>
    %61 = arith.mulf %57, %59 : vector<8x1xf32>
    %62 = vector.shape_cast %12 : vector<1x32xi1> to vector<1x32xi1>
    %63 = vector.broadcast %62 : vector<1x32xi1> to vector<8x32xi1>
    %64 = vector.shape_cast %51 : vector<8x1xf32> to vector<8x1xf32>
    %65 = vector.broadcast %64 : vector<8x1xf32> to vector<8x32xf32>
    %66 = vector.shape_cast %61 : vector<8x1xf32> to vector<8x1xf32>
    %67 = vector.broadcast %66 : vector<8x1xf32> to vector<8x32xf32>
    %68 = arith.select %63, %65, %67 : vector<8x32xi1>, vector<8x32xf32>
    %69 = vector.shape_cast %12 : vector<1x32xi1> to vector<1x32xi1>
    %70 = vector.broadcast %69 : vector<1x32xi1> to vector<8x32xi1>
    %71 = vector.shape_cast %60 : vector<8x1xf32> to vector<8x1xf32>
    %72 = vector.broadcast %71 : vector<8x1xf32> to vector<8x32xf32>
    %73 = vector.shape_cast %52 : vector<8x1xf32> to vector<8x1xf32>
    %74 = vector.broadcast %73 : vector<8x1xf32> to vector<8x32xf32>
    %75 = arith.select %70, %72, %74 : vector<8x32xi1>, vector<8x32xf32>
    %c0_14 = arith.constant 0 : index
    %c0_15 = arith.constant 0 : index
    %76 = vector.load %arg5[%c0_14, %c0_15] : memref<3x32xf32, #tpu.memory_space<vmem>>, vector<3x32xf32>
    %77 = vector.extract_strided_slice %76 {offsets = [0, 0], sizes = [1, 32], strides = [1, 1]} : vector<3x32xf32> to vector<1x32xf32>
    %78 = vector.extract_strided_slice %76 {offsets = [1, 0], sizes = [1, 32], strides = [1, 1]} : vector<3x32xf32> to vector<1x32xf32>
    %79 = vector.extract_strided_slice %76 {offsets = [2, 0], sizes = [1, 32], strides = [1, 1]} : vector<3x32xf32> to vector<1x32xf32>
    %80 = arith.mulf %68, %8 : vector<8x32xf32>
    %c0_16 = arith.constant 0 : index
    %c0_17 = arith.constant 0 : index
    %c0_18 = arith.constant 0 : index
    %81 = vector.load %arg4[%c0_16, %c0_17, %c0_18] : memref<2x32x32xf32, #tpu.memory_space<vmem>>, vector<1x32x32xf32>
    %82 = vector.shape_cast %81 : vector<1x32x32xf32> to vector<32x32xf32>
    %cst_19 = arith.constant dense<0.000000e+00> : vector<8x32xf32>
    %83 = tpu.matmul %80, %82, %cst_19 {dimension_numbers = #tpu.dot_dimension_numbers<[1], [0], [0], [1], [0, 0, 1, 1], [], []>} : vector<8x32xf32>, vector<32x32xf32>, vector<8x32xf32> -> vector<8x32xf32>
    %84 = arith.mulf %75, %8 : vector<8x32xf32>
    %c1 = arith.constant 1 : index
    %c0_20 = arith.constant 0 : index
    %c0_21 = arith.constant 0 : index
    %85 = vector.load %arg4[%c1, %c0_20, %c0_21] : memref<2x32x32xf32, #tpu.memory_space<vmem>>, vector<1x32x32xf32>
    %86 = vector.shape_cast %85 : vector<1x32x32xf32> to vector<32x32xf32>
    %cst_22 = arith.constant dense<0.000000e+00> : vector<8x32xf32>
    %87 = tpu.matmul %84, %86, %cst_22 {dimension_numbers = #tpu.dot_dimension_numbers<[1], [0], [0], [1], [0, 0, 1, 1], [], []>} : vector<8x32xf32>, vector<32x32xf32>, vector<8x32xf32> -> vector<8x32xf32>
    %88 = arith.addf %83, %87 : vector<8x32xf32>
    %89 = vector.broadcast %77 : vector<1x32xf32> to vector<8x32xf32>
    %90 = arith.addf %88, %89 : vector<8x32xf32>
    %91 = arith.addf %90, %0 : vector<8x32xf32>
    %cst_23 = arith.constant dense<0.000000e+00> : vector<8xf32>
    %92 = vector.multi_reduction <add>, %91, %cst_23 [1] : vector<8x32xf32> to vector<8xf32>
    %93 = vector.shape_cast %92 : vector<8xf32> to vector<8x1xf32>
    %cst_24 = arith.constant 3.200000e+01 : f32
    %94 = vector.broadcast %cst_24 : f32 to vector<8x1xf32>
    %95 = arith.divf %93, %94 : vector<8x1xf32>
    %96 = vector.broadcast %95 : vector<8x1xf32> to vector<8x32xf32>
    %97 = arith.subf %91, %96 : vector<8x32xf32>
    %98 = arith.mulf %97, %97 : vector<8x32xf32>
    %cst_25 = arith.constant dense<0.000000e+00> : vector<8xf32>
    %99 = vector.multi_reduction <add>, %98, %cst_25 [1] : vector<8x32xf32> to vector<8xf32>
    %100 = vector.shape_cast %99 : vector<8xf32> to vector<8x1xf32>
    %cst_26 = arith.constant 3.200000e+01 : f32
    %101 = vector.broadcast %cst_26 : f32 to vector<8x1xf32>
    %102 = arith.divf %100, %101 : vector<8x1xf32>
    %cst_27 = arith.constant 9.99999996E-13 : f32
    %103 = vector.broadcast %cst_27 : f32 to vector<8x1xf32>
    %104 = arith.addf %102, %103 : vector<8x1xf32>
    %105 = math.rsqrt %104 : vector<8x1xf32>
    %106 = vector.broadcast %105 : vector<8x1xf32> to vector<8x32xf32>
    %107 = arith.mulf %97, %106 : vector<8x32xf32>
    %108 = vector.broadcast %78 : vector<1x32xf32> to vector<8x32xf32>
    %109 = arith.mulf %108, %107 : vector<8x32xf32>
    %110 = vector.broadcast %79 : vector<1x32xf32> to vector<8x32xf32>
    %111 = arith.addf %109, %110 : vector<8x32xf32>
    %c0_28 = arith.constant 0 : index
    %c0_29 = arith.constant 0 : index
    %112 = vector.load %arg6[%c0_28, %c0_29] : memref<32x32xf32, #tpu.memory_space<vmem>>, vector<32x32xf32>
    %cst_30 = arith.constant dense<0.000000e+00> : vector<8x32xf32>
    %113 = tpu.matmul %111, %112, %cst_30 {dimension_numbers = #tpu.dot_dimension_numbers<[1], [0], [0], [1], [0, 0, 1, 1], [], []>} : vector<8x32xf32>, vector<32x32xf32>, vector<8x32xf32> -> vector<8x32xf32>
    %c0_31 = arith.constant 0 : index
    %c0_32 = arith.constant 0 : index
    %114 = vector.load %arg7[%c0_31, %c0_32] : memref<1x32xf32, #tpu.memory_space<vmem>>, vector<1x32xf32>
    %115 = vector.broadcast %114 : vector<1x32xf32> to vector<8x32xf32>
    %116 = arith.addf %113, %115 : vector<8x32xf32>
    %cst_33 = arith.constant 0.000000e+00 : f32
    %117 = vector.broadcast %cst_33 : f32 to vector<8x32xf32>
    %118 = arith.maximumf %116, %117 : vector<8x32xf32>
    %c0_34 = arith.constant 0 : index
    %c0_35 = arith.constant 0 : index
    %119 = vector.load %arg8[%c0_34, %c0_35] : memref<32x8xf32, #tpu.memory_space<vmem>>, vector<32x8xf32>
    %cst_36 = arith.constant dense<0.000000e+00> : vector<8x8xf32>
    %120 = tpu.matmul %118, %119, %cst_36 {dimension_numbers = #tpu.dot_dimension_numbers<[1], [0], [0], [1], [0, 0, 1, 1], [], []>} : vector<8x32xf32>, vector<32x8xf32>, vector<8x8xf32> -> vector<8x8xf32>
    %c0_37 = arith.constant 0 : index
    %c0_38 = arith.constant 0 : index
    %121 = vector.load %arg9[%c0_37, %c0_38] : memref<1x8xf32, #tpu.memory_space<vmem>>, vector<1x8xf32>
    %122 = vector.broadcast %121 : vector<1x8xf32> to vector<8x8xf32>
    %123 = arith.addf %120, %122 : vector<8x8xf32>
    %cst_39 = arith.constant dense<0xFF800000> : vector<8xf32>
    %124 = vector.multi_reduction <maximumf>, %123, %cst_39 [1] : vector<8x8xf32> to vector<8xf32>
    %125 = vector.shape_cast %124 : vector<8xf32> to vector<8x1xf32>
    %126 = vector.broadcast %125 : vector<8x1xf32> to vector<8x8xf32>
    %127 = arith.subf %123, %126 : vector<8x8xf32>
    %128 = math.exp %127 : vector<8x8xf32>
    %cst_40 = arith.constant dense<0.000000e+00> : vector<8xf32>
    %129 = vector.multi_reduction <add>, %128, %cst_40 [1] : vector<8x8xf32> to vector<8xf32>
    %130 = vector.shape_cast %129 : vector<8xf32> to vector<8x1xf32>
    %131 = tpu.reciprocal %130 : vector<8x1xf32> -> vector<8x1xf32>
    %132 = vector.broadcast %131 : vector<8x1xf32> to vector<8x8xf32>
    %133 = arith.mulf %128, %132 : vector<8x8xf32>
    %c0_41 = arith.constant 0 : index
    %c0_42 = arith.constant 0 : index
    %134 = vector.load %arg10[%c0_41, %c0_42] : memref<8x8xf32, #tpu.memory_space<vmem>>, vector<8x8xf32>
    tpu.vector_store %arg10[%c0_41, %c0_42], %133 {strides = array<i32>} : memref<8x8xf32, #tpu.memory_space<vmem>>, vector<8x8xf32>,
    return
  }
  func.func @transform_0(%arg0: i32) -> (i32, i32) {
    %c0_i32 = arith.constant 0 : i32
    %c0_i32_0 = arith.constant 0 : i32
    return %arg0, %c0_i32 : i32, i32
  }
  func.func @transform_1(%arg0: i32) -> (i32, i32) {
    %c0_i32 = arith.constant 0 : i32
    %c0_i32_0 = arith.constant 0 : i32
    %c0_i32_1 = arith.constant 0 : i32
    return %c0_i32, %c0_i32_0 : i32, i32
  }
  func.func @transform_2(%arg0: i32) -> (i32, i32) {
    %c0_i32 = arith.constant 0 : i32
    %c0_i32_0 = arith.constant 0 : i32
    %c0_i32_1 = arith.constant 0 : i32
    return %c0_i32, %c0_i32_0 : i32, i32
  }
  func.func @transform_3(%arg0: i32) -> (i32, i32, i32) {
    %c0_i32 = arith.constant 0 : i32
    %c0_i32_0 = arith.constant 0 : i32
    %c0_i32_1 = arith.constant 0 : i32
    %c0_i32_2 = arith.constant 0 : i32
    return %c0_i32, %c0_i32_0, %c0_i32_1 : i32, i32, i32
  }
  func.func @transform_4(%arg0: i32) -> (i32, i32) {
    %c0_i32 = arith.constant 0 : i32
    %c0_i32_0 = arith.constant 0 : i32
    %c0_i32_1 = arith.constant 0 : i32
    return %c0_i32, %c0_i32_0 : i32, i32
  }
  func.func @transform_5(%arg0: i32) -> (i32, i32) {
    %c0_i32 = arith.constant 0 : i32
    %c0_i32_0 = arith.constant 0 : i32
    %c0_i32_1 = arith.constant 0 : i32
    return %c0_i32, %c0_i32_0 : i32, i32
  }
  func.func @transform_6(%arg0: i32) -> (i32, i32) {
    %c0_i32 = arith.constant 0 : i32
    %c0_i32_0 = arith.constant 0 : i32
    %c0_i32_1 = arith.constant 0 : i32
    return %c0_i32, %c0_i32_0 : i32, i32
  }
  func.func @transform_7(%arg0: i32) -> (i32, i32) {
    %c0_i32 = arith.constant 0 : i32
    %c0_i32_0 = arith.constant 0 : i32
    %c0_i32_1 = arith.constant 0 : i32
    return %c0_i32, %c0_i32_0 : i32, i32
  }
  func.func @transform_8(%arg0: i32) -> (i32, i32) {
    %c0_i32 = arith.constant 0 : i32
    %c0_i32_0 = arith.constant 0 : i32
    %c0_i32_1 = arith.constant 0 : i32
    return %c0_i32, %c0_i32_0 : i32, i32
  }
  func.func @transform_9(%arg0: i32) -> (i32, i32) {
    %c0_i32 = arith.constant 0 : i32
    %c0_i32_0 = arith.constant 0 : i32
    return %arg0, %c0_i32 : i32, i32
  }
}

</mosaic_0001>

<llo_original>
// kernel: clu_head_forward.1
$region0: #{clu_head_forward.1}
  #allocation0 [shape = 'u32[]', space=smem, size = 0x4, offset = 0x4, fixed_abs, tag = 'smem constant byte address 0x4 - core index']
  #allocation1 [shape = 'u32[144,128]{1,0:T(1,128)}', space=vmem, size = 0x12000, scoped, tag = 'internal scratch']
  %s0 = inlined_call_operand.vmem [shape: f32[8,32], index: 0, kind: input, shape index: {}]
  %s1 = inlined_call_operand.vmem [shape: f32[32,128], index: 1, kind: input, shape index: {}]
  %s2 = inlined_call_operand.vmem [shape: f32[1,128], index: 2, kind: input, shape index: {}]
  %s3 = inlined_call_operand.hbm [shape: f32[2,32,32], index: 3, kind: input, shape index: {}]
  %s4 = inlined_call_operand.vmem [shape: f32[3,32], index: 4, kind: input, shape index: {}]
  %s5 = inlined_call_operand.hbm [shape: f32[32,32], index: 5, kind: input, shape index: {}]
  %s6 = inlined_call_operand.vmem [shape: f32[1,32], index: 6, kind: input, shape index: {}]
  %s7 = inlined_call_operand.vmem [shape: f32[32,8], index: 7, kind: input, shape index: {}]
  %s8 = inlined_call_operand.vmem [shape: f32[1,8], index: 8, kind: input, shape index: {}]
  %s9 = inlined_call_operand.hbm [shape: f32[8,8], index: 9, kind: output, shape index: {}]
  %s10 = sld [smem:[#allocation0]]
  $region54: #{clu_head_forward.1} parent=0
    _
  %s12 = ssub.s32 1, %s10
  %s13 = scalar_select 0, %s12, %s10
  $region1: #{clu_head_forward.1} parent=0
    #allocation2 [shape = 'u8[32768]{0}', space=vmem, size = 0x8000, scoped, tag = 'input window, operand 3, single buffered']
    #allocation3 [shape = 's32[1]{0}', space=sflag, size = 0x4, scoped, tag = 'scoped memory for clu_head_forward.1']
    #allocation4 [shape = 's32[1]{0}', space=sflag, size = 0x4, scoped, tag = 'scoped memory for clu_head_forward.1']
    #allocation5 [shape = 'u8[16384]{0}', space=vmem, size = 0x4000, scoped, tag = 'input window, operand 5, single buffered']
    #allocation6 [shape = 's32[1]{0}', space=sflag, size = 0x4, scoped, tag = 'scoped memory for clu_head_forward.1']
    #allocation7 [shape = 'u8[4096]{0}', space=vmem, size = 0x1000, scoped, tag = 'output window, operand 0, single buffered']
    %14 = vsyncpa [#allocation3], 0
    %15 = vsyncpa [#allocation6], 0
    %16 = vsyncpa [#allocation4], 0
    // Predicated region
    $region2: #{clu_head_forward.1} parent=1 // pred_check
      _
    $region3: #{clu_head_forward.1} parent=1 // pred_check_branch
      %18 = sbr.rel (0) target = $region5
    $region4: #{clu_head_forward.1} parent=1 // pred_region
      _
    $region5: #{clu_head_forward.1} parent=1 // pred_fallthru
      _
    // Predicated region
    $region6: #{clu_head_forward.1} parent=1 // pred_check
      _
    $region7: #{clu_head_forward.1} parent=1 // pred_check_branch
      %20 = sbr.rel (0) target = $region9
    $region8: #{clu_head_forward.1} parent=1 // pred_region
      _
    $region9: #{clu_head_forward.1} parent=1 // pred_fallthru
      _
    // Predicated region
    $region10: #{clu_head_forward.1} parent=1 // pred_check
      _
    $region11: #{clu_head_forward.1} parent=1 // pred_check_branch
      %22 = sbr.rel (0) target = $region13
    $region12: #{clu_head_forward.1} parent=1 // pred_region
      _
    $region13: #{clu_head_forward.1} parent=1 // pred_fallthru
      _
    // Predicated region
    $region14: #{clu_head_forward.1} parent=1 // pred_check
      _
    $region15: #{clu_head_forward.1} parent=1 // pred_check_branch
      %24 = sbr.rel (0) target = $region17
    $region16: #{clu_head_forward.1} parent=1 // pred_region
      %s26 = ssub.s32 1024, 1024
      %27 = vsyncadd [#allocation3], %s26
      %s28 = sshll.u32 [#allocation2], 4
      %s29 = int_to_ptr.vmem [resolvable:$true] %s28
      %34 = dma.hbm_to_vmem [thread:$0]  %s3, 1024, %s29, [#allocation3], 128, 128, 8
    $region17: #{clu_head_forward.1} parent=1 // pred_fallthru
      _
    // Predicated region
    $region18: #{clu_head_forward.1} parent=1 // pred_check
      _
    $region19: #{clu_head_forward.1} parent=1 // pred_check_branch
      %36 = sbr.rel (0) target = $region21
    $region20: #{clu_head_forward.1} parent=1 // pred_region
      _
    $region21: #{clu_head_forward.1} parent=1 // pred_fallthru
      _
    // Predicated region
    $region22: #{clu_head_forward.1} parent=1 // pred_check
      _
    $region23: #{clu_head_forward.1} parent=1 // pred_check_branch
      %38 = sbr.rel (0) target = $region25
    $region24: #{clu_head_forward.1} parent=1 // pred_region
      %s40 = ssub.s32 512, 512
      %41 = vsyncadd [#allocation6], %s40
      %s42 = sshll.u32 [#allocation5], 4
      %s43 = int_to_ptr.vmem [resolvable:$true] %s42
      %48 = dma.hbm_to_vmem [thread:$0]  %s5, 512, %s43, [#allocation6], 128, 128, 8
    $region25: #{clu_head_forward.1} parent=1 // pred_fallthru
      _
    // Predicated region
    $region26: #{clu_head_forward.1} parent=1 // pred_check
      _
    $region27: #{clu_head_forward.1} parent=1 // pred_check_branch
      %50 = sbr.rel (0) target = $region29
    $region28: #{clu_head_forward.1} parent=1 // pred_region
      _
    $region29: #{clu_head_forward.1} parent=1 // pred_fallthru
      _
    // Predicated region
    $region30: #{clu_head_forward.1} parent=1 // pred_check
      _
    $region31: #{clu_head_forward.1} parent=1 // pred_check_branch
      %52 = sbr.rel (0) target = $region33
    $region32: #{clu_head_forward.1} parent=1 // pred_region
      _
    $region33: #{clu_head_forward.1} parent=1 // pred_fallthru
      _
    // Predicated region
    $region34: #{clu_head_forward.1} parent=1 // pred_check
      _
    $region35: #{clu_head_forward.1} parent=1 // pred_check_branch
      %54 = sbr.rel (0) target = $region37
    $region36: #{clu_head_forward.1} parent=1 // pred_region
      _
    $region37: #{clu_head_forward.1} parent=1 // pred_fallthru
      _
    // Predicated region
    $region38: #{clu_head_forward.1} parent=1 // pred_check
      _
    $region39: #{clu_head_forward.1} parent=1 // pred_check_branch
      %56 = sbr.rel (0) target = $region41
    $region40: #{clu_head_forward.1} parent=1 // pred_region
      %57 = dma.done [#allocation3], 1024
    $region41: #{clu_head_forward.1} parent=1 // pred_fallthru
      _
    // Predicated region
    $region42: #{clu_head_forward.1} parent=1 // pred_check
      _
    $region43: #{clu_head_forward.1} parent=1 // pred_check_branch
      %59 = sbr.rel (0) target = $region45
    $region44: #{clu_head_forward.1} parent=1 // pred_region
      %60 = dma.done [#allocation6], 512
    $region45: #{clu_head_forward.1} parent=1 // pred_fallthru
      _
    %v61 = vld [vmem:[%s0] sm:$0xff]
    %v62 = vld [vmem:[%s1] sm:$0xff]
    %v63 = vld [vmem:[%s1 + $0x8] sm:$0xff]
    %v64 = vld [vmem:[%s1 + $0x10] sm:$0xff]
    %v65 = vld [vmem:[%s1 + $0x18] sm:$0xff]
    %v66 = vld [vmem:[%s2] sm:$0x1]
    %v68 = vlaneseq
    %v69 = vshrl.u32 %v68, 7
    %v70 = vsub.s32 0, %v69
    %v71 = vrot.slane %v66, %v70
    %vm73 = vcmask 261120
    %v75 = vsel %vm73, %v61, 0
    %77 = vmatprep.subr.mxu0 0.0
    %78 = vmatpush1.msra.mxu0 %v62
    %79 = vmatprep.subr.mxu0 0.0
    %80 = vmatpush1.msra.mxu0 %v63
    %81 = vmatprep.subr.mxu0 0.0
    %82 = vmatpush1.msra.mxu0 %v64
    %83 = vmatprep.subr.mxu0 0.0
    %84 = vmatpush1.msra.mxu0 %v65
    %85 = vmatprep.subr.mxu0 0.0
    %86 = vmatpush1.msra.mxu0 0.0
    %87 = vmatprep.subr.mxu0 0.0
    %88 = vmatpush1.msra.mxu0 0.0
    %89 = vmatprep.subr.mxu0 0.0
    %90 = vmatpush1.msra.mxu0 0.0
    %91 = vmatprep.subr.mxu0 0.0
    %92 = vmatpush1.msra.mxu0 0.0
    %93 = vmatprep.subr.mxu0 0.0
    %94 = vmatpush1.msra.mxu0 0.0
    %95 = vmatprep.subr.mxu0 0.0
    %96 = vmatpush1.msra.mxu0 0.0
    %97 = vmatprep.subr.mxu0 0.0
    %98 = vmatpush1.msra.mxu0 0.0
    %99 = vmatprep.subr.mxu0 0.0
    %100 = vmatpush1.msra.mxu0 0.0
    %101 = vmatprep.subr.mxu0 0.0
    %102 = vmatpush1.msra.mxu0 0.0
    %103 = vmatprep.subr.mxu0 0.0
    %104 = vmatpush1.msra.mxu0 0.0
    %105 = vmatprep.subr.mxu0 0.0
    %106 = vmatpush1.msra.mxu0 0.0
    %107 = vmatprep.subr.mxu0 0.0
    %108 = vmatpush1.msra.mxu0 0.0
    %109 = vmatprep.subr.mxu0 0.0
    %110 = vmatpush1.msra.mxu0 0.0
    %111 = vmatprep.subr.mxu0 0.0
    %112 = vmatpush1.msra.mxu0 0.0
    %113 = vmatprep.subr.mxu0 0.0
    %114 = vmatpush1.msra.mxu0 0.0
    %115 = vmatprep.subr.mxu0 0.0
    %116 = vmatpush1.msra.mxu0 0.0
    %117 = vmatprep.subr.mxu0 0.0
    %118 = vmatpush1.msra.mxu0 0.0
    %119 = vmatprep.subr.mxu0 0.0
    %120 = vmatpush1.msra.mxu0 0.0
    %121 = vmatprep.subr.mxu0 0.0
    %122 = vmatpush1.msra.mxu0 0.0
    %123 = vmatprep.subr.mxu0 0.0
    %124 = vmatpush1.msra.mxu0 0.0
    %125 = vmatprep.subr.mxu0 0.0
    %126 = vmatpush1.msra.mxu0 0.0
    %127 = vmatprep.subr.mxu0 0.0
    %128 = vmatpush1.msra.mxu0 0.0
    %129 = vmatprep.subr.mxu0 0.0
    %130 = vmatpush1.msra.mxu0 0.0
    %131 = vmatprep.subr.mxu0 0.0
    %132 = vmatpush1.msra.mxu0 0.0
    %133 = vmatprep.subr.mxu0 0.0
    %134 = vmatpush1.msra.mxu0 0.0
    %135 = vmatprep.subr.mxu0 0.0
    %136 = vmatpush1.msra.mxu0 0.0
    %137 = vmatprep.subr.mxu0 0.0
    %138 = vmatpush1.msra.mxu0 0.0
    %139 = vmatprep.subr.mxu0 0.0
    %140 = vmatpush1.msra.mxu0 0.0
    %141 = vmatprep.mubr.f32.mxu0 0.0
    %142 = vmatmul.mubr.f32.gmra.mrb[0].mxu0 %v75
    %v143 = vpop.f32.mrb[0].mxu0
    %v144 = vadd.f32 %v71, %v143
    %v145 = vpop.f32.mrb[0].mxu0
    %146 = vdwg.mxu0
    %v147 = vlaneseq
    %v148 = vand.u32 %v147, 127
    %vm149 = vcmp.lt.s32.totalorder %v148, 16
    %151 = vrot.lane.b32.xlu0 %v144, 96
    %v152 = vpop.permute.xlu0 %151
    %v154 = vmul.f32 %v144, %v152
    %155 = vrot.lane.b32.xlu0 %v144, 32
    %v156 = vpop.permute.xlu0 %155
    %v158 = vmul.f32 %v144, %v156
    %v159 = vsel %vm149, 1, 0
    %vm160 = vcmp.eq.s32.totalorder %v159, 1
    %v161 = vsel %vm160, %v154, 0.0
    %v162 = vsel %vm73, %v161, 0.0
    %163 = vadd.xlane.f32.xlu0 %v162
    %v164 = vpop.xlane.xlu0 %163
    %v165 = vmul.f32 %v164, 0.25
    %v166 = vsel %vm160, %v158, 0.0
    %v167 = vsel %vm73, %v166, 0.0
    %168 = vadd.xlane.f32.xlu0 %v167
    %v169 = vpop.xlane.xlu0 %168
    %v170 = vmul.f32 %v169, 0.25
    %v171 = vsel %vm160, 0.0, %v158
    %v172 = vsel %vm73, %v171, 0.0
    %173 = vadd.xlane.f32.xlu0 %v172
    %v174 = vpop.xlane.xlu0 %173
    %v175 = vmul.f32 %v174, 0.25
    %v176 = vsel %vm160, 0.0, %v154
    %v177 = vsel %vm73, %v176, 0.0
    %178 = vadd.xlane.f32.xlu0 %v177
    %v179 = vpop.xlane.xlu0 %178
    %v180 = vmul.f32 %v179, 0.25
    %v181 = vmax.f32 %v165, %v170
    %v182 = vsub.f32 %v165, %v181
    %v183 = vmul.f32 %v182, 1.442695
    %v184 = vpow.pop %v183
    %v185 = vsub.f32 %v170, %v181
    %v186 = vmul.f32 %v185, 1.442695
    %v187 = vpow.pop %v186
    %v188 = vadd.f32 %v184, %v187
    %v189 = vrcp.pop %v188
    %v190 = vmul.f32 %v184, %v189
    %v191 = vmul.f32 %v187, %v189
    %v192 = vmax.f32 %v175, %v180
    %v193 = vsub.f32 %v175, %v192
    %v194 = vmul.f32 %v193, 1.442695
    %v195 = vpow.pop %v194
    %v196 = vsub.f32 %v180, %v192
    %v197 = vmul.f32 %v196, 1.442695
    %v198 = vpow.pop %v197
    %v199 = vadd.f32 %v195, %v198
    %v200 = vrcp.pop %v199
    %v201 = vmul.f32 %v195, %v200
    %v202 = vmul.f32 %v198, %v200
    %v203 = vsel %vm160, %v190, %v202
    %v204 = vsel %vm160, %v201, %v191
    %v205 = vld [vmem:[%s4] sm:$0x7]
    %206 = vrot.lane.b32.xlu0 %v144, 64
    %v207 = vpop.permute.xlu0 %206
    %v209 = vmul.f32 %v203, %v207
    %v210 = vld [vmem:[#allocation2] sm:$0xff]
    %v211 = vld [vmem:[#allocation2 + $0x8] sm:$0xff]
    %v212 = vld [vmem:[#allocation2 + $0x10] sm:$0xff]
    %v213 = vld [vmem:[#allocation2 + $0x18] sm:$0xff]
    %v214 = vmul.f32 %v204, %v207
    %s215 = scalar_lea.vmem [#allocation2], 32
    %v216 = vld [vmem:[%s215] sm:$0xff]
    %v217 = vld [vmem:[%s215 + $0x8] sm:$0xff]
    %v218 = vld [vmem:[%s215 + $0x10] sm:$0xff]
    %v219 = vld [vmem:[%s215 + $0x18] sm:$0xff]
    %v221 = vsel %vm73, %v214, 0
    %223 = vmatprep.subr.mxu0 0.0
    %224 = vmatpush1.msra.mxu0 %v216
    %225 = vmatprep.subr.mxu0 0.0
    %226 = vmatpush1.msra.mxu0 %v217
    %227 = vmatprep.subr.mxu0 0.0
    %228 = vmatpush1.msra.mxu0 %v218
    %229 = vmatprep.subr.mxu0 0.0
    %230 = vmatpush1.msra.mxu0 %v219
    %231 = vmatprep.subr.mxu0 0.0
    %232 = vmatpush1.msra.mxu0 0.0
    %233 = vmatprep.subr.mxu0 0.0
    %234 = vmatpush1.msra.mxu0 0.0
    %235 = vmatprep.subr.mxu0 0.0
    %236 = vmatpush1.msra.mxu0 0.0
    %237 = vmatprep.subr.mxu0 0.0
    %238 = vmatpush1.msra.mxu0 0.0
    %239 = vmatprep.subr.mxu0 0.0
    %240 = vmatpush1.msra.mxu0 0.0
    %241 = vmatprep.subr.mxu0 0.0
    %242 = vmatpush1.msra.mxu0 0.0
    %243 = vmatprep.subr.mxu0 0.0
    %244 = vmatpush1.msra.mxu0 0.0
    %245 = vmatprep.subr.mxu0 0.0
    %246 = vmatpush1.msra.mxu0 0.0
    %247 = vmatprep.subr.mxu0 0.0
    %248 = vmatpush1.msra.mxu0 0.0
    %249 = vmatprep.subr.mxu0 0.0
    %250 = vmatpush1.msra.mxu0 0.0
    %251 = vmatprep.subr.mxu0 0.0
    %252 = vmatpush1.msra.mxu0 0.0
    %253 = vmatprep.subr.mxu0 0.0
    %254 = vmatpush1.msra.mxu0 0.0
    %255 = vmatprep.subr.mxu0 0.0
    %256 = vmatpush1.msra.mxu0 0.0
    %257 = vmatprep.subr.mxu0 0.0
    %258 = vmatpush1.msra.mxu0 0.0
    %259 = vmatprep.subr.mxu0 0.0
    %260 = vmatpush1.msra.mxu0 0.0
    %261 = vmatprep.subr.mxu0 0.0
    %262 = vmatpush1.msra.mxu0 0.0
    %263 = vmatprep.subr.mxu0 0.0
    %264 = vmatpush1.msra.mxu0 0.0
    %265 = vmatprep.subr.mxu0 0.0
    %266 = vmatpush1.msra.mxu0 0.0
    %267 = vmatprep.subr.mxu0 0.0
    %268 = vmatpush1.msra.mxu0 0.0
    %269 = vmatprep.subr.mxu0 0.0
    %270 = vmatpush1.msra.mxu0 0.0
    %271 = vmatprep.subr.mxu0 0.0
    %272 = vmatpush1.msra.mxu0 0.0
    %273 = vmatprep.subr.mxu0 0.0
    %274 = vmatpush1.msra.mxu0 0.0
    %275 = vmatprep.subr.mxu0 0.0
    %276 = vmatpush1.msra.mxu0 0.0
    %277 = vmatprep.subr.mxu0 0.0
    %278 = vmatpush1.msra.mxu0 0.0
    %279 = vmatprep.subr.mxu0 0.0
    %280 = vmatpush1.msra.mxu0 0.0
    %281 = vmatprep.subr.mxu0 0.0
    %282 = vmatpush1.msra.mxu0 0.0
    %283 = vmatprep.subr.mxu0 0.0
    %284 = vmatpush1.msra.mxu0 0.0
    %285 = vmatprep.subr.mxu0 0.0
    %286 = vmatpush1.msra.mxu0 0.0
    %287 = vmatprep.mubr.f32.mxu0 0.0
    %288 = vmatmul.mubr.f32.gmra.mrb[0].mxu0 %v221
    %v289 = vpop.f32.mrb[0].mxu0
    %v290 = vadd.f32 0.0, %v289
    %v291 = vpop.f32.mrb[0].mxu0
    %292 = vdwg.mxu0
    %v294 = vsel %vm73, %v209, 0
    %296 = vmatprep.subr.mxu0 0.0
    %297 = vmatpush1.msra.mxu0 %v210
    %298 = vmatprep.subr.mxu0 0.0
    %299 = vmatpush1.msra.mxu0 %v211
    %300 = vmatprep.subr.mxu0 0.0
    %301 = vmatpush1.msra.mxu0 %v212
    %302 = vmatprep.subr.mxu0 0.0
    %303 = vmatpush1.msra.mxu0 %v213
    %304 = vmatprep.subr.mxu0 0.0
    %305 = vmatpush1.msra.mxu0 0.0
    %306 = vmatprep.subr.mxu0 0.0
    %307 = vmatpush1.msra.mxu0 0.0
    %308 = vmatprep.subr.mxu0 0.0
    %309 = vmatpush1.msra.mxu0 0.0
    %310 = vmatprep.subr.mxu0 0.0
    %311 = vmatpush1.msra.mxu0 0.0
    %312 = vmatprep.subr.mxu0 0.0
    %313 = vmatpush1.msra.mxu0 0.0
    %314 = vmatprep.subr.mxu0 0.0
    %315 = vmatpush1.msra.mxu0 0.0
    %316 = vmatprep.subr.mxu0 0.0
    %317 = vmatpush1.msra.mxu0 0.0
    %318 = vmatprep.subr.mxu0 0.0
    %319 = vmatpush1.msra.mxu0 0.0
    %320 = vmatprep.subr.mxu0 0.0
    %321 = vmatpush1.msra.mxu0 0.0
    %322 = vmatprep.subr.mxu0 0.0
    %323 = vmatpush1.msra.mxu0 0.0
    %324 = vmatprep.subr.mxu0 0.0
    %325 = vmatpush1.msra.mxu0 0.0
    %326 = vmatprep.subr.mxu0 0.0
    %327 = vmatpush1.msra.mxu0 0.0
    %328 = vmatprep.subr.mxu0 0.0
    %329 = vmatpush1.msra.mxu0 0.0
    %330 = vmatprep.subr.mxu0 0.0
    %331 = vmatpush1.msra.mxu0 0.0
    %332 = vmatprep.subr.mxu0 0.0
    %333 = vmatpush1.msra.mxu0 0.0
    %334 = vmatprep.subr.mxu0 0.0
    %335 = vmatpush1.msra.mxu0 0.0
    %336 = vmatprep.subr.mxu0 0.0
    %337 = vmatpush1.msra.mxu0 0.0
    %338 = vmatprep.subr.mxu0 0.0
    %339 = vmatpush1.msra.mxu0 0.0
    %340 = vmatprep.subr.mxu0 0.0
    %341 = vmatpush1.msra.mxu0 0.0
    %342 = vmatprep.subr.mxu0 0.0
    %343 = vmatpush1.msra.mxu0 0.0
    %344 = vmatprep.subr.mxu0 0.0
    %345 = vmatpush1.msra.mxu0 0.0
    %346 = vmatprep.subr.mxu0 0.0
    %347 = vmatpush1.msra.mxu0 0.0
    %348 = vmatprep.subr.mxu0 0.0
    %349 = vmatpush1.msra.mxu0 0.0
    %350 = vmatprep.subr.mxu0 0.0
    %351 = vmatpush1.msra.mxu0 0.0
    %352 = vmatprep.subr.mxu0 0.0
    %353 = vmatpush1.msra.mxu0 0.0
    %354 = vmatprep.subr.mxu0 0.0
    %355 = vmatpush1.msra.mxu0 0.0
    %356 = vmatprep.subr.mxu0 0.0
    %357 = vmatpush1.msra.mxu0 0.0
    %358 = vmatprep.subr.mxu0 0.0
    %359 = vmatpush1.msra.mxu0 0.0
    %360 = vmatprep.mubr.f32.mxu0 0.0
    %361 = vmatmul.mubr.f32.gmra.mrb[0].mxu0 %v294
    %v362 = vpop.f32.mrb[0].mxu0
    %v363 = vadd.f32 %v290, %v362
    %v364 = vpop.f32.mrb[0].mxu0
    %365 = vdwg.mxu0
    %v366 = vlaneseq
    %v367 = vshrl.u32 %v366, 7
    %v368 = vsub.s32 0, %v367
    %v369 = vrot.slane %v205, %v368
    %v370 = vadd.f32 %v363, %v369
    %v371 = vadd.f32 %v370, %v61
    %v372 = vsel %vm73, %v371, 0.0
    %373 = vadd.xlane.f32.xlu0 %v372
    %v374 = vpop.xlane.xlu0 %373
    %v375 = vrcp.pop 32.0
    %v376 = vmul.f32 %v374, %v375
    %v377 = vsub.f32 %v371, %v376
    %v378 = vmul.f32 %v377, %v377
    %v379 = vsel %vm73, %v378, 0.0
    %380 = vadd.xlane.f32.xlu0 %v379
    %v381 = vpop.xlane.xlu0 %380
    %v382 = vmul.f32 %v381, %v375
    %v383 = vadd.f32 %v382, 1e-12
    %v384 = vrsqrt.pop %v383
    %v385 = vmul.f32 %v377, %v384
    %v386 = vlaneseq
    %v387 = vshrl.u32 %v386, 7
    %v388 = vsub.s32 1, %v387
    %v389 = vrot.slane %v205, %v388
    %v390 = vmul.f32 %v389, %v385
    %v391 = vlaneseq
    %v392 = vshrl.u32 %v391, 7
    %v393 = vsub.s32 2, %v392
    %v394 = vrot.slane %v205, %v393
    %v395 = vadd.f32 %v390, %v394
    %v396 = vld [vmem:[#allocation5] sm:$0xff]
    %v397 = vld [vmem:[#allocation5 + $0x8] sm:$0xff]
    %v398 = vld [vmem:[#allocation5 + $0x10] sm:$0xff]
    %v399 = vld [vmem:[#allocation5 + $0x18] sm:$0xff]
    %v400 = vld [vmem:[%s6] sm:$0x1]
    %v402 = vlaneseq
    %v403 = vshrl.u32 %v402, 7
    %v404 = vsub.s32 0, %v403
    %v405 = vrot.slane %v400, %v404
    %v408 = vsel %vm73, %v395, 0
    %410 = vmatprep.subr.mxu0 0.0
    %411 = vmatpush1.msra.mxu0 %v396
    %412 = vmatprep.subr.mxu0 0.0
    %413 = vmatpush1.msra.mxu0 %v397
    %414 = vmatprep.subr.mxu0 0.0
    %415 = vmatpush1.msra.mxu0 %v398
    %416 = vmatprep.subr.mxu0 0.0
    %417 = vmatpush1.msra.mxu0 %v399
    %418 = vmatprep.subr.mxu0 0.0
    %419 = vmatpush1.msra.mxu0 0.0
    %420 = vmatprep.subr.mxu0 0.0
    %421 = vmatpush1.msra.mxu0 0.0
    %422 = vmatprep.subr.mxu0 0.0
    %423 = vmatpush1.msra.mxu0 0.0
    %424 = vmatprep.subr.mxu0 0.0
    %425 = vmatpush1.msra.mxu0 0.0
    %426 = vmatprep.subr.mxu0 0.0
    %427 = vmatpush1.msra.mxu0 0.0
    %428 = vmatprep.subr.mxu0 0.0
    %429 = vmatpush1.msra.mxu0 0.0
    %430 = vmatprep.subr.mxu0 0.0
    %431 = vmatpush1.msra.mxu0 0.0
    %432 = vmatprep.subr.mxu0 0.0
    %433 = vmatpush1.msra.mxu0 0.0
    %434 = vmatprep.subr.mxu0 0.0
    %435 = vmatpush1.msra.mxu0 0.0
    %436 = vmatprep.subr.mxu0 0.0
    %437 = vmatpush1.msra.mxu0 0.0
    %438 = vmatprep.subr.mxu0 0.0
    %439 = vmatpush1.msra.mxu0 0.0
    %440 = vmatprep.subr.mxu0 0.0
    %441 = vmatpush1.msra.mxu0 0.0
    %442 = vmatprep.subr.mxu0 0.0
    %443 = vmatpush1.msra.mxu0 0.0
    %444 = vmatprep.subr.mxu0 0.0
    %445 = vmatpush1.msra.mxu0 0.0
    %446 = vmatprep.subr.mxu0 0.0
    %447 = vmatpush1.msra.mxu0 0.0
    %448 = vmatprep.subr.mxu0 0.0
    %449 = vmatpush1.msra.mxu0 0.0
    %450 = vmatprep.subr.mxu0 0.0
    %451 = vmatpush1.msra.mxu0 0.0
    %452 = vmatprep.subr.mxu0 0.0
    %453 = vmatpush1.msra.mxu0 0.0
    %454 = vmatprep.subr.mxu0 0.0
    %455 = vmatpush1.msra.mxu0 0.0
    %456 = vmatprep.subr.mxu0 0.0
    %457 = vmatpush1.msra.mxu0 0.0
    %458 = vmatprep.subr.mxu0 0.0
    %459 = vmatpush1.msra.mxu0 0.0
    %460 = vmatprep.subr.mxu0 0.0
    %461 = vmatpush1.msra.mxu0 0.0
    %462 = vmatprep.subr.mxu0 0.0
    %463 = vmatpush1.msra.mxu0 0.0
    %464 = vmatprep.subr.mxu0 0.0
    %465 = vmatpush1.msra.mxu0 0.0
    %466 = vmatprep.subr.mxu0 0.0
    %467 = vmatpush1.msra.mxu0 0.0
    %468 = vmatprep.subr.mxu0 0.0
    %469 = vmatpush1.msra.mxu0 0.0
    %470 = vmatprep.subr.mxu0 0.0
    %471 = vmatpush1.msra.mxu0 0.0
    %472 = vmatprep.subr.mxu0 0.0
    %473 = vmatpush1.msra.mxu0 0.0
    %474 = vmatprep.mubr.f32.mxu0 0.0
    %475 = vmatmul.mubr.f32.gmra.mrb[0].mxu0 %v408
    %v476 = vpop.f32.mrb[0].mxu0
    %v477 = vadd.f32 %v405, %v476
    %v478 = vpop.f32.mrb[0].mxu0
    %479 = vdwg.mxu0
    %v480 = vmax.f32 %v477, 0.0
    %v481 = vld [vmem:[%s7] sm:$0xff]
    %v482 = vld [vmem:[%s7 + $0x8] sm:$0xff]
    %v483 = vld [vmem:[%s7 + $0x10] sm:$0xff]
    %v484 = vld [vmem:[%s7 + $0x18] sm:$0xff]
    %v485 = vld [vmem:[%s8] sm:$0x1]
    %v487 = vlaneseq
    %v488 = vshrl.u32 %v487, 7
    %v489 = vsub.s32 0, %v488
    %v490 = vrot.slane %v485, %v489
    %v493 = vsel %vm73, %v480, 0
    %495 = vmatprep.subr.mxu0 0.0
    %496 = vmatpush1.msra.mxu0 %v481
    %497 = vmatprep.subr.mxu0 0.0
    %498 = vmatpush1.msra.mxu0 %v482
    %499 = vmatprep.subr.mxu0 0.0
    %500 = vmatpush1.msra.mxu0 %v483
    %501 = vmatprep.subr.mxu0 0.0
    %502 = vmatpush1.msra.mxu0 %v484
    %503 = vmatprep.subr.mxu0 0.0
    %504 = vmatpush1.msra.mxu0 0.0
    %505 = vmatprep.subr.mxu0 0.0
    %506 = vmatpush1.msra.mxu0 0.0
    %507 = vmatprep.subr.mxu0 0.0
    %508 = vmatpush1.msra.mxu0 0.0
    %509 = vmatprep.subr.mxu0 0.0
    %510 = vmatpush1.msra.mxu0 0.0
    %511 = vmatprep.subr.mxu0 0.0
    %512 = vmatpush1.msra.mxu0 0.0
    %513 = vmatprep.subr.mxu0 0.0
    %514 = vmatpush1.msra.mxu0 0.0
    %515 = vmatprep.subr.mxu0 0.0
    %516 = vmatpush1.msra.mxu0 0.0
    %517 = vmatprep.subr.mxu0 0.0
    %518 = vmatpush1.msra.mxu0 0.0
    %519 = vmatprep.subr.mxu0 0.0
    %520 = vmatpush1.msra.mxu0 0.0
    %521 = vmatprep.subr.mxu0 0.0
    %522 = vmatpush1.msra.mxu0 0.0
    %523 = vmatprep.subr.mxu0 0.0
    %524 = vmatpush1.msra.mxu0 0.0
    %525 = vmatprep.subr.mxu0 0.0
    %526 = vmatpush1.msra.mxu0 0.0
    %527 = vmatprep.subr.mxu0 0.0
    %528 = vmatpush1.msra.mxu0 0.0
    %529 = vmatprep.subr.mxu0 0.0
    %530 = vmatpush1.msra.mxu0 0.0
    %531 = vmatprep.subr.mxu0 0.0
    %532 = vmatpush1.msra.mxu0 0.0
    %533 = vmatprep.subr.mxu0 0.0
    %534 = vmatpush1.msra.mxu0 0.0
    %535 = vmatprep.subr.mxu0 0.0
    %536 = vmatpush1.msra.mxu0 0.0
    %537 = vmatprep.subr.mxu0 0.0
    %538 = vmatpush1.msra.mxu0 0.0
    %539 = vmatprep.subr.mxu0 0.0
    %540 = vmatpush1.msra.mxu0 0.0
    %541 = vmatprep.subr.mxu0 0.0
    %542 = vmatpush1.msra.mxu0 0.0
    %543 = vmatprep.subr.mxu0 0.0
    %544 = vmatpush1.msra.mxu0 0.0
    %545 = vmatprep.subr.mxu0 0.0
    %546 = vmatpush1.msra.mxu0 0.0
    %547 = vmatprep.subr.mxu0 0.0
    %548 = vmatpush1.msra.mxu0 0.0
    %549 = vmatprep.subr.mxu0 0.0
    %550 = vmatpush1.msra.mxu0 0.0
    %551 = vmatprep.subr.mxu0 0.0
    %552 = vmatpush1.msra.mxu0 0.0
    %553 = vmatprep.subr.mxu0 0.0
    %554 = vmatpush1.msra.mxu0 0.0
    %555 = vmatprep.subr.mxu0 0.0
    %556 = vmatpush1.msra.mxu0 0.0
    %557 = vmatprep.subr.mxu0 0.0
    %558 = vmatpush1.msra.mxu0 0.0
    %559 = vmatprep.mubr.f32.mxu0 0.0
    %560 = vmatmul.mubr.f32.gmra.mrb[0].mxu0 %v493
    %v561 = vpop.f32.mrb[0].mxu0
    %v562 = vadd.f32 %v490, %v561
    %v563 = vpop.f32.mrb[0].mxu0
    %564 = vdwg.mxu0
    %vm565 = vcmask 64512
    %v566 = vsel %vm565, %v562, -inf
    %567 = vmax.xlane.f32.xlu0 %v566
    %v568 = vpop.xlane.xlu0 %567
    %v569 = vsub.f32 %v562, %v568
    %v570 = vmul.f32 %v569, 1.442695
    %v571 = vpow.pop %v570
    %v572 = vsel %vm565, %v571, 0.0
    %573 = vadd.xlane.f32.xlu0 %v572
    %v574 = vpop.xlane.xlu0 %573
    %v575 = vrcp.pop %v574
    %v576 = vmul.f32 %v571, %v575
    %577 = vst.msk [vmem:[#allocation7] sm:$0xff] %vm565, %v576
    // Predicated region
    $region46: #{clu_head_forward.1} parent=1 // pred_check
      _
    $region47: #{clu_head_forward.1} parent=1 // pred_check_branch
      %579 = sbr.rel (0) target = $region49
    $region48: #{clu_head_forward.1} parent=1 // pred_region
      %s581 = ssub.s32 128, 128
      %582 = vsyncadd [#allocation4], %s581
      %s584 = sshll.u32 [#allocation7], 4
      %s585 = int_to_ptr.vmem [resolvable:$true] %s584
      %587 = dma.vmem_to_hbm [thread:$0]  %s585, 128, %s9, [#allocation4]
    $region49: #{clu_head_forward.1} parent=1 // pred_fallthru
      _
    // Predicated region
    $region50: #{clu_head_forward.1} parent=1 // pred_check
      _
    $region51: #{clu_head_forward.1} parent=1 // pred_check_branch
      %589 = sbr.rel (0) target = $region53
    $region52: #{clu_head_forward.1} parent=1 // pred_region
      %590 = dma.done [#allocation4], 128
    $region53: #{clu_head_forward.1} parent=1 // pred_fallthru
      _
    %591 = vsyncpa [#allocation3], 1
    %592 = vsyncpa [#allocation6], 1
    %593 = vsyncpa [#allocation4], 1

</llo_original>
